<compile_context>
chip_gen: v5e
topology: v5e:2x2
jax: 0.10.0
libtpu: 0.0.40
codegen_flags: <defaults>
</compile_context>

<pallas_src>
import jax
import jax.numpy as jnp
from jax import lax
from jax.experimental import pallas as pl
from jax.experimental.pallas import tpu as pltpu


def _ssam_kernel(x_ref, coef_ref, o_ref):
    # x_ref:    (TILE_N, H*W)  input tile
    # coef_ref: (H*W, 128)     constant: cols 0,1,2 = xc, yc, 1 (rest zero)
    # o_ref:    (TILE_N, 128)  cols 0,1 = x_mean, y_mean (rest don't-care)
    x = x_ref[...].astype(jnp.float32)

    # Numerically-stable softmax numerator.
    m = jnp.max(x, axis=-1, keepdims=True)
    e = jnp.exp(x - m)

    # One MXU matmul performs all three row reductions at once:
    #   acc[:, 0] = sum(e*xc), acc[:, 1] = sum(e*yc), acc[:, 2] = sum(e).
    acc = jnp.dot(e, coef_ref[...],
                  preferred_element_type=jnp.float32,
                  precision=lax.Precision.HIGHEST)

    # Softmax division deferred to the reduced values (TILE_N values, not
    # TILE_N*H*W lanes).  approx=True would push this onto the EUP; exact
    # division keeps tight numerical agreement with the reference.
    inv_s = pl.reciprocal(acc[:, 2:3], approx=False)
    o_ref[...] = (acc * inv_s).astype(o_ref.dtype)


def _pick_tile_n(n, hw):
    """Largest multiple-of-8 row tile keeping double-buffered f32 input <= ~8 MiB."""
    budget_rows = (8 * 1024 * 1024) // (2 * 4 * hw)
    tile = max(8, min(512, (budget_rows // 8) * 8))
    n_up8 = ((n + 7) // 8) * 8
    return min(tile, n_up8)


def _coord_columns(h, w, normalize):
    # Matches torch.meshgrid(linspace/arange, indexing='ij'); linspace with a
    # single point returns [-1], so h==1 / w==1 are handled without inf/nan.
    if normalize:
        ys = jnp.linspace(-1.0, 1.0, h)
        xs = jnp.linspace(-1.0, 1.0, w)
    else:
        ys = jnp.arange(h, dtype=jnp.float32)
        xs = jnp.arange(w, dtype=jnp.float32)
    yc, xc = jnp.meshgrid(ys, xs, indexing="ij")
    return xc.reshape(-1).astype(jnp.float32), yc.reshape(-1).astype(jnp.float32)


def spatial_soft_argmax(x, normalize=True):
    """x: (B, C, H, W) array. Returns (B, C, 2) float32, [x_mean, y_mean]."""
    assert x.ndim == 4, "Expecting a tensor of shape (B, C, H, W)."
    b, c, h, w = x.shape
    n, hw = b * c, h * w
    xf = x.reshape(n, hw)

    tile_n = _pick_tile_n(n, hw)
    n_pad = pl.cdiv(n, tile_n) * tile_n
    if n_pad != n:
        # Padded rows produce a harmless finite softmax and are sliced off below.
        xf = jnp.pad(xf, ((0, n_pad - n), (0, 0)))

    xc, yc = _coord_columns(h, w, normalize)
    coef = jnp.concatenate(
        [xc[:, None], yc[:, None],
         jnp.ones((hw, 1), jnp.float32),
         jnp.zeros((hw, 125), jnp.float32)], axis=1)  # (hw, 128)

    out = pl.pallas_call(
        _ssam_kernel,
        out_shape=jax.ShapeDtypeStruct((n_pad, 128), jnp.float32),
        grid=(n_pad // tile_n,),
        in_specs=[
            pl.BlockSpec((tile_n, hw), lambda i: (i, 0)),
            # Constant block index -> fetched into VMEM once, reused every step.
            pl.BlockSpec((hw, 128), lambda i: (0, 0)),
        ],
        out_specs=pl.BlockSpec((tile_n, 128), lambda i: (i, 0)),
        compiler_params=pltpu.CompilerParams(
            dimension_semantics=("parallel",),
            vmem_limit_bytes=48 * 1024 * 1024,  # < 64 MiB physical on v7x
        ),
    )(xf, coef)

    # Lane-dense slab -> (B, C, 2) [x_mean, y_mean].
    return out[:n, :2].reshape(b, c, 2)


def _reference(x, normalize=True):
    b, c, h, w = x.shape
    xf = x.reshape(b * c, h * w).astype(jnp.float32)
    p = jax.nn.softmax(xf, axis=-1)
    if normalize:
        ys = jnp.linspace(-1.0, 1.0, h)
        xs = jnp.linspace(-1.0, 1.0, w)
    else:
        ys = jnp.arange(h, dtype=jnp.float32)
        xs = jnp.arange(w, dtype=jnp.float32)
    yc, xc = jnp.meshgrid(ys, xs, indexing="ij")
    x_mean = jnp.sum(p * xc.reshape(-1), axis=-1, keepdims=True)
    y_mean = jnp.sum(p * yc.reshape(-1), axis=-1, keepdims=True)
    return jnp.concatenate([x_mean, y_mean], axis=1).reshape(b, c, 2)


if __name__ == "__main__":
    key = jax.random.PRNGKey(0)
    B, C, H, W = 2, 4, 16, 16
    x = jax.random.normal(key, (B, C, H, W), dtype=jnp.float32)

    out = jax.block_until_ready(spatial_soft_argmax(x, normalize=True))
    ref = _reference(x, normalize=True)
    assert out.shape == (B, C, 2)
    assert jnp.allclose(out, ref, atol=1e-4, rtol=1e-4), \
        f"max abs err (normalize=True) = {float(jnp.max(jnp.abs(out - ref)))}"

    out2 = jax.block_until_ready(spatial_soft_argmax(x, normalize=False))
    ref2 = _reference(x, normalize=False)
    assert jnp.allclose(out2, ref2, atol=1e-3, rtol=1e-4), \
        f"max abs err (normalize=False) = {float(jnp.max(jnp.abs(out2 - ref2)))}"

    print("KERNEL_OK")
</pallas_src>

<mosaic_0001>
module attributes {stable_mosaic.version = 11 : i64} {
  func.func @_ssam_kernel(%arg0: i32, %arg1: memref<8x256xf32, #tpu.memory_space<vmem>>, %arg2: memref<256x128xf32, #tpu.memory_space<vmem>>, %arg3: memref<8x128xf32, #tpu.memory_space<vmem>>) attributes {dimension_semantics = [#tpu.dimension_semantics<parallel>], iteration_bounds = array<i64: 1>, scalar_prefetch = 0 : i64, scratch_operands = 0 : i64, tpu.core_type = #tpu.core_type<tc>, window_params = [{transform_indices = @transform_0, window_bounds = array<i64: 8, 256>}, {pipeline_mode = #tpu.pipeline_mode<synchronous>, transform_indices = @transform_1, window_bounds = array<i64: 256, 128>}, {transform_indices = @transform_2, window_bounds = array<i64: 8, 128>}]} {
    %c0 = arith.constant 0 : index
    %c0_0 = arith.constant 0 : index
    %0 = vector.load %arg1[%c0, %c0_0] : memref<8x256xf32, #tpu.memory_space<vmem>>, vector<8x256xf32>
    %cst = arith.constant dense<0xFF800000> : vector<8xf32>
    %1 = vector.multi_reduction <maximumf>, %0, %cst [1] : vector<8x256xf32> to vector<8xf32>
    %2 = vector.shape_cast %1 : vector<8xf32> to vector<8x1xf32>
    %3 = vector.broadcast %2 : vector<8x1xf32> to vector<8x256xf32>
    %4 = arith.subf %0, %3 : vector<8x256xf32>
    %5 = math.exp %4 : vector<8x256xf32>
    %c0_1 = arith.constant 0 : index
    %c0_2 = arith.constant 0 : index
    %6 = vector.load %arg2[%c0_1, %c0_2] : memref<256x128xf32, #tpu.memory_space<vmem>>, vector<256x128xf32>
    %cst_3 = arith.constant dense<0.000000e+00> : vector<8x128xf32>
    %7 = tpu.matmul %5, %6, %cst_3 {dimension_numbers = #tpu.dot_dimension_numbers<[1], [0], [0], [1], [0, 0, 1, 1], [], []>, precision = #tpu.contract_precision<fp32>} : vector<8x256xf32>, vector<256x128xf32>, vector<8x128xf32> -> vector<8x128xf32>
    %8 = vector.extract_strided_slice %7 {offsets = [0, 2], sizes = [8, 1], strides = [1, 1]} : vector<8x128xf32> to vector<8x1xf32>
    %9 = tpu.reciprocal %8 : vector<8x1xf32> -> vector<8x1xf32>
    %10 = vector.broadcast %9 : vector<8x1xf32> to vector<8x128xf32>
    %11 = arith.mulf %7, %10 : vector<8x128xf32>
    %c0_4 = arith.constant 0 : index
    %c0_5 = arith.constant 0 : index
    %12 = vector.load %arg3[%c0_4, %c0_5] : memref<8x128xf32, #tpu.memory_space<vmem>>, vector<8x128xf32>
    tpu.vector_store %arg3[%c0_4, %c0_5], %11 {strides = array<i32>} : memref<8x128xf32, #tpu.memory_space<vmem>>, vector<8x128xf32>,
    return
  }
  func.func @transform_0(%arg0: i32) -> (i32, i32) {
    %c0_i32 = arith.constant 0 : i32
    %c0_i32_0 = arith.constant 0 : i32
    return %arg0, %c0_i32 : i32, i32
  }
  func.func @transform_1(%arg0: i32) -> (i32, i32) {
    %c0_i32 = arith.constant 0 : i32
    %c0_i32_0 = arith.constant 0 : i32
    %c0_i32_1 = arith.constant 0 : i32
    return %c0_i32, %c0_i32_0 : i32, i32
  }
  func.func @transform_2(%arg0: i32) -> (i32, i32) {
    %c0_i32 = arith.constant 0 : i32
    %c0_i32_0 = arith.constant 0 : i32
    return %arg0, %c0_i32 : i32, i32
  }
}

</mosaic_0001>

<llo_original>
// kernel: tpu_custom_call.1
$region0: #{tpu_custom_call.1}
  #allocation0 [shape = 'u32[]', space=smem, size = 0x4, offset = 0x4, fixed_abs, tag = 'smem constant byte address 0x4 - core index']
  #allocation1 [shape = 'u32[72,128]{1,0:T(1,128)}', space=vmem, size = 0x9000, scoped, tag = 'internal scratch']
  %s0 = inlined_call_operand.hbm [shape: f32[8,256], index: 0, kind: input, shape index: {}]
  %s1 = inlined_call_operand.hbm [shape: f32[256,128], index: 1, kind: input, shape index: {}]
  %s2 = inlined_call_operand.hbm [shape: f32[8,128], index: 2, kind: output, shape index: {}]
  %s3 = sld [smem:[#allocation0]]
  $region26: #{tpu_custom_call.1} parent=0
    _
  %s5 = ssub.s32 1, %s3
  %s6 = scalar_select 0, %s5, %s3
  $region1: #{tpu_custom_call.1} parent=0
    #allocation2 [shape = 'u8[8192]{0}', space=vmem, size = 0x2000, scoped, tag = 'input window, operand 0, single buffered']
    #allocation3 [shape = 's32[1]{0}', space=sflag, size = 0x4, scoped, tag = 'scoped memory for tpu_custom_call.1']
    #allocation4 [shape = 's32[1]{0}', space=sflag, size = 0x4, scoped, tag = 'scoped memory for tpu_custom_call.1']
    #allocation5 [shape = 'u8[131072]{0}', space=vmem, size = 0x20000, scoped, tag = 'input window, operand 1, single buffered']
    #allocation6 [shape = 's32[1]{0}', space=sflag, size = 0x4, scoped, tag = 'scoped memory for tpu_custom_call.1']
    #allocation7 [shape = 'u8[4096]{0}', space=vmem, size = 0x1000, scoped, tag = 'output window, operand 0, single buffered']
    %7 = vsyncpa [#allocation3], 0
    %8 = vsyncpa [#allocation6], 0
    %9 = vsyncpa [#allocation4], 0
    // Predicated region
    $region2: #{tpu_custom_call.1} parent=1 // pred_check
      _
    $region3: #{tpu_custom_call.1} parent=1 // pred_check_branch
      %11 = sbr.rel (0) target = $region5
    $region4: #{tpu_custom_call.1} parent=1 // pred_region
      %13 = vsyncadd [#allocation3], 0
      %s15 = sshll.u32 %s0, 4
      %s16 = int_to_ptr.hbm [resolvable:$true] %s15
      %s17 = sshll.u32 [#allocation2], 4
      %s18 = int_to_ptr.vmem [resolvable:$true] %s17
      %20 = dma.hbm_to_vmem [thread:$0]  %s16, 256, %s18, [#allocation3]
    $region5: #{tpu_custom_call.1} parent=1 // pred_fallthru
      _
    // Predicated region
    $region6: #{tpu_custom_call.1} parent=1 // pred_check
      _
    $region7: #{tpu_custom_call.1} parent=1 // pred_check_branch
      %22 = sbr.rel (0) target = $region9
    $region8: #{tpu_custom_call.1} parent=1 // pred_region
      %24 = vsyncadd [#allocation6], 0
      %s25 = sshll.u32 %s1, 4
      %s26 = int_to_ptr.hbm [resolvable:$true] %s25
      %s27 = sshll.u32 [#allocation5], 4
      %s28 = int_to_ptr.vmem [resolvable:$true] %s27
      %33 = dma.hbm_to_vmem [thread:$0]  %s26, 4096, %s28, [#allocation6], 128, 128, 8
    $region9: #{tpu_custom_call.1} parent=1 // pred_fallthru
      _
    // Predicated region
    $region10: #{tpu_custom_call.1} parent=1 // pred_check
      _
    $region11: #{tpu_custom_call.1} parent=1 // pred_check_branch
      %35 = sbr.rel (0) target = $region13
    $region12: #{tpu_custom_call.1} parent=1 // pred_region
      %37 = dma.done [#allocation3], 256
    $region13: #{tpu_custom_call.1} parent=1 // pred_fallthru
      _
    // Predicated region
    $region14: #{tpu_custom_call.1} parent=1 // pred_check
      _
    $region15: #{tpu_custom_call.1} parent=1 // pred_check_branch
      %39 = sbr.rel (0) target = $region17
    $region16: #{tpu_custom_call.1} parent=1 // pred_region
      %41 = dma.done [#allocation6], 4096
    $region17: #{tpu_custom_call.1} parent=1 // pred_fallthru
      _
    %v42 = vld [vmem:[#allocation2] sm:$0xff]
    %v43 = vld [vmem:[#allocation2 + $0x8] sm:$0xff]
    %v44 = vmax.f32 %v42, %v43
    %45 = vmax.xlane.f32.xlu0 %v44
    %v46 = vpop.xlane.xlu0 %45
    %v47 = vsub.f32 %v42, %v46
    %v48 = vsub.f32 %v43, %v46
    %v49 = vmul.f32 %v47, 1.442695
    %v50 = vpow.pop %v49
    %v51 = vmul.f32 %v48, 1.442695
    %v52 = vpow.pop %v51
    %v53 = vld [vmem:[#allocation5] sm:$0xff]
    %v54 = vld [vmem:[#allocation5 + $0x8] sm:$0xff]
    %v55 = vld [vmem:[#allocation5 + $0x10] sm:$0xff]
    %v56 = vld [vmem:[#allocation5 + $0x18] sm:$0xff]
    %v57 = vld [vmem:[#allocation5 + $0x20] sm:$0xff]
    %v58 = vld [vmem:[#allocation5 + $0x28] sm:$0xff]
    %v59 = vld [vmem:[#allocation5 + $0x30] sm:$0xff]
    %v60 = vld [vmem:[#allocation5 + $0x38] sm:$0xff]
    %v61 = vld [vmem:[#allocation5 + $0x40] sm:$0xff]
    %v62 = vld [vmem:[#allocation5 + $0x48] sm:$0xff]
    %v63 = vld [vmem:[#allocation5 + $0x50] sm:$0xff]
    %v64 = vld [vmem:[#allocation5 + $0x58] sm:$0xff]
    %v65 = vld [vmem:[#allocation5 + $0x60] sm:$0xff]
    %v66 = vld [vmem:[#allocation5 + $0x68] sm:$0xff]
    %v67 = vld [vmem:[#allocation5 + $0x70] sm:$0xff]
    %v68 = vld [vmem:[#allocation5 + $0x78] sm:$0xff]
    %v69 = vld [vmem:[#allocation5 + $0x80] sm:$0xff]
    %v70 = vld [vmem:[#allocation5 + $0x88] sm:$0xff]
    %v71 = vld [vmem:[#allocation5 + $0x90] sm:$0xff]
    %v72 = vld [vmem:[#allocation5 + $0x98] sm:$0xff]
    %v73 = vld [vmem:[#allocation5 + $0xa0] sm:$0xff]
    %v74 = vld [vmem:[#allocation5 + $0xa8] sm:$0xff]
    %v75 = vld [vmem:[#allocation5 + $0xb0] sm:$0xff]
    %v76 = vld [vmem:[#allocation5 + $0xb8] sm:$0xff]
    %v77 = vld [vmem:[#allocation5 + $0xc0] sm:$0xff]
    %v78 = vld [vmem:[#allocation5 + $0xc8] sm:$0xff]
    %v79 = vld [vmem:[#allocation5 + $0xd0] sm:$0xff]
    %v80 = vld [vmem:[#allocation5 + $0xd8] sm:$0xff]
    %v81 = vld [vmem:[#allocation5 + $0xe0] sm:$0xff]
    %v82 = vld [vmem:[#allocation5 + $0xe8] sm:$0xff]
    %v83 = vld [vmem:[#allocation5 + $0xf0] sm:$0xff]
    %v84 = vld [vmem:[#allocation5 + $0xf8] sm:$0xff]
    %v85 = vand.u32 %v68, 4294901760
    %86 = vmatpush.msra.mxu0 %v85
    %v87 = vand.u32 %v67, 4294901760
    %88 = vmatpush.msra.mxu0 %v87
    %v89 = vand.u32 %v66, 4294901760
    %90 = vmatpush.msra.mxu0 %v89
    %v91 = vand.u32 %v65, 4294901760
    %92 = vmatpush.msra.mxu0 %v91
    %v93 = vand.u32 %v64, 4294901760
    %94 = vmatpush.msra.mxu0 %v93
    %v95 = vand.u32 %v63, 4294901760
    %96 = vmatpush.msra.mxu0 %v95
    %v97 = vand.u32 %v62, 4294901760
    %98 = vmatpush.msra.mxu0 %v97
    %v99 = vand.u32 %v61, 4294901760
    %100 = vmatpush.msra.mxu0 %v99
    %v101 = vand.u32 %v60, 4294901760
    %102 = vmatpush.msra.mxu0 %v101
    %v103 = vand.u32 %v59, 4294901760
    %104 = vmatpush.msra.mxu0 %v103
    %v105 = vand.u32 %v58, 4294901760
    %106 = vmatpush.msra.mxu0 %v105
    %v107 = vand.u32 %v57, 4294901760
    %108 = vmatpush.msra.mxu0 %v107
    %v109 = vand.u32 %v56, 4294901760
    %110 = vmatpush.msra.mxu0 %v109
    %v111 = vand.u32 %v55, 4294901760
    %112 = vmatpush.msra.mxu0 %v111
    %v113 = vand.u32 %v54, 4294901760
    %114 = vmatpush.msra.mxu0 %v113
    %v115 = vand.u32 %v53, 4294901760
    %116 = vmatpush.msra.mxu0 %v115
    %v117 = vand.u32 %v50, 4294901760
    %v118 = vsub.f32 %v50, %v117
    %v119 = vand.u32 %v118, 4294901760
    %v120 = vsub.f32 %v118, %v119
    %v121 = vand.u32 %v120, 4294901760
    %122 = vmatmul.f32.gmra.mxu0 %v121
    %v123 = vpop.f32.mrf.mxu0
    %v124 = vadd.f32 0.0, %v123
    %125 = vdwg.mxu0
    %v126 = vand.u32 %v68, 4294901760
    %v127 = vsub.f32 %v68, %v126
    %v128 = vand.u32 %v127, 4294901760
    %v129 = vsub.f32 %v127, %v128
    %v130 = vand.u32 %v129, 4294901760
    %131 = vmatpush.msra.mxu0 %v130
    %v132 = vand.u32 %v67, 4294901760
    %v133 = vsub.f32 %v67, %v132
    %v134 = vand.u32 %v133, 4294901760
    %v135 = vsub.f32 %v133, %v134
    %v136 = vand.u32 %v135, 4294901760
    %137 = vmatpush.msra.mxu0 %v136
    %v138 = vand.u32 %v66, 4294901760
    %v139 = vsub.f32 %v66, %v138
    %v140 = vand.u32 %v139, 4294901760
    %v141 = vsub.f32 %v139, %v140
    %v142 = vand.u32 %v141, 4294901760
    %143 = vmatpush.msra.mxu0 %v142
    %v144 = vand.u32 %v65, 4294901760
    %v145 = vsub.f32 %v65, %v144
    %v146 = vand.u32 %v145, 4294901760
    %v147 = vsub.f32 %v145, %v146
    %v148 = vand.u32 %v147, 4294901760
    %149 = vmatpush.msra.mxu0 %v148
    %v150 = vand.u32 %v64, 4294901760
    %v151 = vsub.f32 %v64, %v150
    %v152 = vand.u32 %v151, 4294901760
    %v153 = vsub.f32 %v151, %v152
    %v154 = vand.u32 %v153, 4294901760
    %155 = vmatpush.msra.mxu0 %v154
    %v156 = vand.u32 %v63, 4294901760
    %v157 = vsub.f32 %v63, %v156
    %v158 = vand.u32 %v157, 4294901760
    %v159 = vsub.f32 %v157, %v158
    %v160 = vand.u32 %v159, 4294901760
    %161 = vmatpush.msra.mxu0 %v160
    %v162 = vand.u32 %v62, 4294901760
    %v163 = vsub.f32 %v62, %v162
    %v164 = vand.u32 %v163, 4294901760
    %v165 = vsub.f32 %v163, %v164
    %v166 = vand.u32 %v165, 4294901760
    %167 = vmatpush.msra.mxu0 %v166
    %v168 = vand.u32 %v61, 4294901760
    %v169 = vsub.f32 %v61, %v168
    %v170 = vand.u32 %v169, 4294901760
    %v171 = vsub.f32 %v169, %v170
    %v172 = vand.u32 %v171, 4294901760
    %173 = vmatpush.msra.mxu0 %v172
    %v174 = vand.u32 %v60, 4294901760
    %v175 = vsub.f32 %v60, %v174
    %v176 = vand.u32 %v175, 4294901760
    %v177 = vsub.f32 %v175, %v176
    %v178 = vand.u32 %v177, 4294901760
    %179 = vmatpush.msra.mxu0 %v178
    %v180 = vand.u32 %v59, 4294901760
    %v181 = vsub.f32 %v59, %v180
    %v182 = vand.u32 %v181, 4294901760
    %v183 = vsub.f32 %v181, %v182
    %v184 = vand.u32 %v183, 4294901760
    %185 = vmatpush.msra.mxu0 %v184
    %v186 = vand.u32 %v58, 4294901760
    %v187 = vsub.f32 %v58, %v186
    %v188 = vand.u32 %v187, 4294901760
    %v189 = vsub.f32 %v187, %v188
    %v190 = vand.u32 %v189, 4294901760
    %191 = vmatpush.msra.mxu0 %v190
    %v192 = vand.u32 %v57, 4294901760
    %v193 = vsub.f32 %v57, %v192
    %v194 = vand.u32 %v193, 4294901760
    %v195 = vsub.f32 %v193, %v194
    %v196 = vand.u32 %v195, 4294901760
    %197 = vmatpush.msra.mxu0 %v196
    %v198 = vand.u32 %v56, 4294901760
    %v199 = vsub.f32 %v56, %v198
    %v200 = vand.u32 %v199, 4294901760
    %v201 = vsub.f32 %v199, %v200
    %v202 = vand.u32 %v201, 4294901760
    %203 = vmatpush.msra.mxu0 %v202
    %v204 = vand.u32 %v55, 4294901760
    %v205 = vsub.f32 %v55, %v204
    %v206 = vand.u32 %v205, 4294901760
    %v207 = vsub.f32 %v205, %v206
    %v208 = vand.u32 %v207, 4294901760
    %209 = vmatpush.msra.mxu0 %v208
    %v210 = vand.u32 %v54, 4294901760
    %v211 = vsub.f32 %v54, %v210
    %v212 = vand.u32 %v211, 4294901760
    %v213 = vsub.f32 %v211, %v212
    %v214 = vand.u32 %v213, 4294901760
    %215 = vmatpush.msra.mxu0 %v214
    %v216 = vand.u32 %v53, 4294901760
    %v217 = vsub.f32 %v53, %v216
    %v218 = vand.u32 %v217, 4294901760
    %v219 = vsub.f32 %v217, %v218
    %v220 = vand.u32 %v219, 4294901760
    %221 = vmatpush.msra.mxu0 %v220
    %v222 = vand.u32 %v50, 4294901760
    %223 = vmatmul.f32.gmra.mxu0 %v222
    %v224 = vpop.f32.mrf.mxu0
    %v225 = vadd.f32 %v124, %v224
    %226 = vdwg.mxu0
    %v227 = vand.u32 %v68, 4294901760
    %v228 = vsub.f32 %v68, %v227
    %229 = vmatpush.msra.mxu0 %v228
    %v230 = vand.u32 %v67, 4294901760
    %v231 = vsub.f32 %v67, %v230
    %232 = vmatpush.msra.mxu0 %v231
    %v233 = vand.u32 %v66, 4294901760
    %v234 = vsub.f32 %v66, %v233
    %235 = vmatpush.msra.mxu0 %v234
    %v236 = vand.u32 %v65, 4294901760
    %v237 = vsub.f32 %v65, %v236
    %238 = vmatpush.msra.mxu0 %v237
    %v239 = vand.u32 %v64, 4294901760
    %v240 = vsub.f32 %v64, %v239
    %241 = vmatpush.msra.mxu0 %v240
    %v242 = vand.u32 %v63, 4294901760
    %v243 = vsub.f32 %v63, %v242
    %244 = vmatpush.msra.mxu0 %v243
    %v245 = vand.u32 %v62, 4294901760
    %v246 = vsub.f32 %v62, %v245
    %247 = vmatpush.msra.mxu0 %v246
    %v248 = vand.u32 %v61, 4294901760
    %v249 = vsub.f32 %v61, %v248
    %250 = vmatpush.msra.mxu0 %v249
    %v251 = vand.u32 %v60, 4294901760
    %v252 = vsub.f32 %v60, %v251
    %253 = vmatpush.msra.mxu0 %v252
    %v254 = vand.u32 %v59, 4294901760
    %v255 = vsub.f32 %v59, %v254
    %256 = vmatpush.msra.mxu0 %v255
    %v257 = vand.u32 %v58, 4294901760
    %v258 = vsub.f32 %v58, %v257
    %259 = vmatpush.msra.mxu0 %v258
    %v260 = vand.u32 %v57, 4294901760
    %v261 = vsub.f32 %v57, %v260
    %262 = vmatpush.msra.mxu0 %v261
    %v263 = vand.u32 %v56, 4294901760
    %v264 = vsub.f32 %v56, %v263
    %265 = vmatpush.msra.mxu0 %v264
    %v266 = vand.u32 %v55, 4294901760
    %v267 = vsub.f32 %v55, %v266
    %268 = vmatpush.msra.mxu0 %v267
    %v269 = vand.u32 %v54, 4294901760
    %v270 = vsub.f32 %v54, %v269
    %271 = vmatpush.msra.mxu0 %v270
    %v272 = vand.u32 %v53, 4294901760
    %v273 = vsub.f32 %v53, %v272
    %274 = vmatpush.msra.mxu0 %v273
    %v275 = vand.u32 %v50, 4294901760
    %v276 = vsub.f32 %v50, %v275
    %277 = vmatmul.f32.gmra.mxu0 %v276
    %v278 = vpop.f32.mrf.mxu0
    %v279 = vadd.f32 %v225, %v278
    %280 = vdwg.mxu0
    %v281 = vand.u32 %v68, 4294901760
    %282 = vmatpush.msra.mxu0 %v281
    %v283 = vand.u32 %v67, 4294901760
    %284 = vmatpush.msra.mxu0 %v283
    %v285 = vand.u32 %v66, 4294901760
    %286 = vmatpush.msra.mxu0 %v285
    %v287 = vand.u32 %v65, 4294901760
    %288 = vmatpush.msra.mxu0 %v287
    %v289 = vand.u32 %v64, 4294901760
    %290 = vmatpush.msra.mxu0 %v289
    %v291 = vand.u32 %v63, 4294901760
    %292 = vmatpush.msra.mxu0 %v291
    %v293 = vand.u32 %v62, 4294901760
    %294 = vmatpush.msra.mxu0 %v293
    %v295 = vand.u32 %v61, 4294901760
    %296 = vmatpush.msra.mxu0 %v295
    %v297 = vand.u32 %v60, 4294901760
    %298 = vmatpush.msra.mxu0 %v297
    %v299 = vand.u32 %v59, 4294901760
    %300 = vmatpush.msra.mxu0 %v299
    %v301 = vand.u32 %v58, 4294901760
    %302 = vmatpush.msra.mxu0 %v301
    %v303 = vand.u32 %v57, 4294901760
    %304 = vmatpush.msra.mxu0 %v303
    %v305 = vand.u32 %v56, 4294901760
    %306 = vmatpush.msra.mxu0 %v305
    %v307 = vand.u32 %v55, 4294901760
    %308 = vmatpush.msra.mxu0 %v307
    %v309 = vand.u32 %v54, 4294901760
    %310 = vmatpush.msra.mxu0 %v309
    %v311 = vand.u32 %v53, 4294901760
    %312 = vmatpush.msra.mxu0 %v311
    %v313 = vand.u32 %v50, 4294901760
    %v314 = vsub.f32 %v50, %v313
    %v315 = vand.u32 %v314, 4294901760
    %316 = vmatmul.f32.gmra.mxu0 %v315
    %v317 = vpop.f32.mrf.mxu0
    %v318 = vadd.f32 %v279, %v317
    %319 = vdwg.mxu0
    %v320 = vand.u32 %v68, 4294901760
    %v321 = vsub.f32 %v68, %v320
    %v322 = vand.u32 %v321, 4294901760
    %323 = vmatpush.msra.mxu0 %v322
    %v324 = vand.u32 %v67, 4294901760
    %v325 = vsub.f32 %v67, %v324
    %v326 = vand.u32 %v325, 4294901760
    %327 = vmatpush.msra.mxu0 %v326
    %v328 = vand.u32 %v66, 4294901760
    %v329 = vsub.f32 %v66, %v328
    %v330 = vand.u32 %v329, 4294901760
    %331 = vmatpush.msra.mxu0 %v330
    %v332 = vand.u32 %v65, 4294901760
    %v333 = vsub.f32 %v65, %v332
    %v334 = vand.u32 %v333, 4294901760
    %335 = vmatpush.msra.mxu0 %v334
    %v336 = vand.u32 %v64, 4294901760
    %v337 = vsub.f32 %v64, %v336
    %v338 = vand.u32 %v337, 4294901760
    %339 = vmatpush.msra.mxu0 %v338
    %v340 = vand.u32 %v63, 4294901760
    %v341 = vsub.f32 %v63, %v340
    %v342 = vand.u32 %v341, 4294901760
    %343 = vmatpush.msra.mxu0 %v342
    %v344 = vand.u32 %v62, 4294901760
    %v345 = vsub.f32 %v62, %v344
    %v346 = vand.u32 %v345, 4294901760
    %347 = vmatpush.msra.mxu0 %v346
    %v348 = vand.u32 %v61, 4294901760
    %v349 = vsub.f32 %v61, %v348
    %v350 = vand.u32 %v349, 4294901760
    %351 = vmatpush.msra.mxu0 %v350
    %v352 = vand.u32 %v60, 4294901760
    %v353 = vsub.f32 %v60, %v352
    %v354 = vand.u32 %v353, 4294901760
    %355 = vmatpush.msra.mxu0 %v354
    %v356 = vand.u32 %v59, 4294901760
    %v357 = vsub.f32 %v59, %v356
    %v358 = vand.u32 %v357, 4294901760
    %359 = vmatpush.msra.mxu0 %v358
    %v360 = vand.u32 %v58, 4294901760
    %v361 = vsub.f32 %v58, %v360
    %v362 = vand.u32 %v361, 4294901760
    %363 = vmatpush.msra.mxu0 %v362
    %v364 = vand.u32 %v57, 4294901760
    %v365 = vsub.f32 %v57, %v364
    %v366 = vand.u32 %v365, 4294901760
    %367 = vmatpush.msra.mxu0 %v366
    %v368 = vand.u32 %v56, 4294901760
    %v369 = vsub.f32 %v56, %v368
    %v370 = vand.u32 %v369, 4294901760
    %371 = vmatpush.msra.mxu0 %v370
    %v372 = vand.u32 %v55, 4294901760
    %v373 = vsub.f32 %v55, %v372
    %v374 = vand.u32 %v373, 4294901760
    %375 = vmatpush.msra.mxu0 %v374
    %v376 = vand.u32 %v54, 4294901760
    %v377 = vsub.f32 %v54, %v376
    %v378 = vand.u32 %v377, 4294901760
    %379 = vmatpush.msra.mxu0 %v378
    %v380 = vand.u32 %v53, 4294901760
    %v381 = vsub.f32 %v53, %v380
    %v382 = vand.u32 %v381, 4294901760
    %383 = vmatpush.msra.mxu0 %v382
    %v384 = vand.u32 %v50, 4294901760
    %385 = vmatmul.f32.gmra.mxu0 %v384
    %v386 = vpop.f32.mrf.mxu0
    %v387 = vadd.f32 %v318, %v386
    %388 = vdwg.mxu0
    %v389 = vand.u32 %v68, 4294901760
    %390 = vmatpush.msra.mxu0 %v389
    %v391 = vand.u32 %v67, 4294901760
    %392 = vmatpush.msra.mxu0 %v391
    %v393 = vand.u32 %v66, 4294901760
    %394 = vmatpush.msra.mxu0 %v393
    %v395 = vand.u32 %v65, 4294901760
    %396 = vmatpush.msra.mxu0 %v395
    %v397 = vand.u32 %v64, 4294901760
    %398 = vmatpush.msra.mxu0 %v397
    %v399 = vand.u32 %v63, 4294901760
    %400 = vmatpush.msra.mxu0 %v399
    %v401 = vand.u32 %v62, 4294901760
    %402 = vmatpush.msra.mxu0 %v401
    %v403 = vand.u32 %v61, 4294901760
    %404 = vmatpush.msra.mxu0 %v403
    %v405 = vand.u32 %v60, 4294901760
    %406 = vmatpush.msra.mxu0 %v405
    %v407 = vand.u32 %v59, 4294901760
    %408 = vmatpush.msra.mxu0 %v407
    %v409 = vand.u32 %v58, 4294901760
    %410 = vmatpush.msra.mxu0 %v409
    %v411 = vand.u32 %v57, 4294901760
    %412 = vmatpush.msra.mxu0 %v411
    %v413 = vand.u32 %v56, 4294901760
    %414 = vmatpush.msra.mxu0 %v413
    %v415 = vand.u32 %v55, 4294901760
    %416 = vmatpush.msra.mxu0 %v415
    %v417 = vand.u32 %v54, 4294901760
    %418 = vmatpush.msra.mxu0 %v417
    %v419 = vand.u32 %v53, 4294901760
    %420 = vmatpush.msra.mxu0 %v419
    %v421 = vand.u32 %v50, 4294901760
    %422 = vmatmul.f32.gmra.mxu0 %v421
    %v423 = vpop.f32.mrf.mxu0
    %v424 = vadd.f32 %v387, %v423
    %425 = vdwg.mxu0
    %v426 = vand.u32 %v84, 4294901760
    %427 = vmatpush.msra.mxu0 %v426
    %v428 = vand.u32 %v83, 4294901760
    %429 = vmatpush.msra.mxu0 %v428
    %v430 = vand.u32 %v82, 4294901760
    %431 = vmatpush.msra.mxu0 %v430
    %v432 = vand.u32 %v81, 4294901760
    %433 = vmatpush.msra.mxu0 %v432
    %v434 = vand.u32 %v80, 4294901760
    %435 = vmatpush.msra.mxu0 %v434
    %v436 = vand.u32 %v79, 4294901760
    %437 = vmatpush.msra.mxu0 %v436
    %v438 = vand.u32 %v78, 4294901760
    %439 = vmatpush.msra.mxu0 %v438
    %v440 = vand.u32 %v77, 4294901760
    %441 = vmatpush.msra.mxu0 %v440
    %v442 = vand.u32 %v76, 4294901760
    %443 = vmatpush.msra.mxu0 %v442
    %v444 = vand.u32 %v75, 4294901760
    %445 = vmatpush.msra.mxu0 %v444
    %v446 = vand.u32 %v74, 4294901760
    %447 = vmatpush.msra.mxu0 %v446
    %v448 = vand.u32 %v73, 4294901760
    %449 = vmatpush.msra.mxu0 %v448
    %v450 = vand.u32 %v72, 4294901760
    %451 = vmatpush.msra.mxu0 %v450
    %v452 = vand.u32 %v71, 4294901760
    %453 = vmatpush.msra.mxu0 %v452
    %v454 = vand.u32 %v70, 4294901760
    %455 = vmatpush.msra.mxu0 %v454
    %v456 = vand.u32 %v69, 4294901760
    %457 = vmatpush.msra.mxu0 %v456
    %v458 = vand.u32 %v52, 4294901760
    %v459 = vsub.f32 %v52, %v458
    %v460 = vand.u32 %v459, 4294901760
    %v461 = vsub.f32 %v459, %v460
    %v462 = vand.u32 %v461, 4294901760
    %463 = vmatmul.f32.gmra.mxu0 %v462
    %v464 = vpop.f32.mrf.mxu0
    %v465 = vadd.f32 %v424, %v464
    %466 = vdwg.mxu0
    %v467 = vand.u32 %v84, 4294901760
    %v468 = vsub.f32 %v84, %v467
    %v469 = vand.u32 %v468, 4294901760
    %v470 = vsub.f32 %v468, %v469
    %v471 = vand.u32 %v470, 4294901760
    %472 = vmatpush.msra.mxu0 %v471
    %v473 = vand.u32 %v83, 4294901760
    %v474 = vsub.f32 %v83, %v473
    %v475 = vand.u32 %v474, 4294901760
    %v476 = vsub.f32 %v474, %v475
    %v477 = vand.u32 %v476, 4294901760
    %478 = vmatpush.msra.mxu0 %v477
    %v479 = vand.u32 %v82, 4294901760
    %v480 = vsub.f32 %v82, %v479
    %v481 = vand.u32 %v480, 4294901760
    %v482 = vsub.f32 %v480, %v481
    %v483 = vand.u32 %v482, 4294901760
    %484 = vmatpush.msra.mxu0 %v483
    %v485 = vand.u32 %v81, 4294901760
    %v486 = vsub.f32 %v81, %v485
    %v487 = vand.u32 %v486, 4294901760
    %v488 = vsub.f32 %v486, %v487
    %v489 = vand.u32 %v488, 4294901760
    %490 = vmatpush.msra.mxu0 %v489
    %v491 = vand.u32 %v80, 4294901760
    %v492 = vsub.f32 %v80, %v491
    %v493 = vand.u32 %v492, 4294901760
    %v494 = vsub.f32 %v492, %v493
    %v495 = vand.u32 %v494, 4294901760
    %496 = vmatpush.msra.mxu0 %v495
    %v497 = vand.u32 %v79, 4294901760
    %v498 = vsub.f32 %v79, %v497
    %v499 = vand.u32 %v498, 4294901760
    %v500 = vsub.f32 %v498, %v499
    %v501 = vand.u32 %v500, 4294901760
    %502 = vmatpush.msra.mxu0 %v501
    %v503 = vand.u32 %v78, 4294901760
    %v504 = vsub.f32 %v78, %v503
    %v505 = vand.u32 %v504, 4294901760
    %v506 = vsub.f32 %v504, %v505
    %v507 = vand.u32 %v506, 4294901760
    %508 = vmatpush.msra.mxu0 %v507
    %v509 = vand.u32 %v77, 4294901760
    %v510 = vsub.f32 %v77, %v509
    %v511 = vand.u32 %v510, 4294901760
    %v512 = vsub.f32 %v510, %v511
    %v513 = vand.u32 %v512, 4294901760
    %514 = vmatpush.msra.mxu0 %v513
    %v515 = vand.u32 %v76, 4294901760
    %v516 = vsub.f32 %v76, %v515
    %v517 = vand.u32 %v516, 4294901760
    %v518 = vsub.f32 %v516, %v517
    %v519 = vand.u32 %v518, 4294901760
    %520 = vmatpush.msra.mxu0 %v519
    %v521 = vand.u32 %v75, 4294901760
    %v522 = vsub.f32 %v75, %v521
    %v523 = vand.u32 %v522, 4294901760
    %v524 = vsub.f32 %v522, %v523
    %v525 = vand.u32 %v524, 4294901760
    %526 = vmatpush.msra.mxu0 %v525
    %v527 = vand.u32 %v74, 4294901760
    %v528 = vsub.f32 %v74, %v527
    %v529 = vand.u32 %v528, 4294901760
    %v530 = vsub.f32 %v528, %v529
    %v531 = vand.u32 %v530, 4294901760
    %532 = vmatpush.msra.mxu0 %v531
    %v533 = vand.u32 %v73, 4294901760
    %v534 = vsub.f32 %v73, %v533
    %v535 = vand.u32 %v534, 4294901760
    %v536 = vsub.f32 %v534, %v535
    %v537 = vand.u32 %v536, 4294901760
    %538 = vmatpush.msra.mxu0 %v537
    %v539 = vand.u32 %v72, 4294901760
    %v540 = vsub.f32 %v72, %v539
    %v541 = vand.u32 %v540, 4294901760
    %v542 = vsub.f32 %v540, %v541
    %v543 = vand.u32 %v542, 4294901760
    %544 = vmatpush.msra.mxu0 %v543
    %v545 = vand.u32 %v71, 4294901760
    %v546 = vsub.f32 %v71, %v545
    %v547 = vand.u32 %v546, 4294901760
    %v548 = vsub.f32 %v546, %v547
    %v549 = vand.u32 %v548, 4294901760
    %550 = vmatpush.msra.mxu0 %v549
    %v551 = vand.u32 %v70, 4294901760
    %v552 = vsub.f32 %v70, %v551
    %v553 = vand.u32 %v552, 4294901760
    %v554 = vsub.f32 %v552, %v553
    %v555 = vand.u32 %v554, 4294901760
    %556 = vmatpush.msra.mxu0 %v555
    %v557 = vand.u32 %v69, 4294901760
    %v558 = vsub.f32 %v69, %v557
    %v559 = vand.u32 %v558, 4294901760
    %v560 = vsub.f32 %v558, %v559
    %v561 = vand.u32 %v560, 4294901760
    %562 = vmatpush.msra.mxu0 %v561
    %v563 = vand.u32 %v52, 4294901760
    %564 = vmatmul.f32.gmra.mxu0 %v563
    %v565 = vpop.f32.mrf.mxu0
    %v566 = vadd.f32 %v465, %v565
    %567 = vdwg.mxu0
    %v568 = vand.u32 %v84, 4294901760
    %v569 = vsub.f32 %v84, %v568
    %570 = vmatpush.msra.mxu0 %v569
    %v571 = vand.u32 %v83, 4294901760
    %v572 = vsub.f32 %v83, %v571
    %573 = vmatpush.msra.mxu0 %v572
    %v574 = vand.u32 %v82, 4294901760
    %v575 = vsub.f32 %v82, %v574
    %576 = vmatpush.msra.mxu0 %v575
    %v577 = vand.u32 %v81, 4294901760
    %v578 = vsub.f32 %v81, %v577
    %579 = vmatpush.msra.mxu0 %v578
    %v580 = vand.u32 %v80, 4294901760
    %v581 = vsub.f32 %v80, %v580
    %582 = vmatpush.msra.mxu0 %v581
    %v583 = vand.u32 %v79, 4294901760
    %v584 = vsub.f32 %v79, %v583
    %585 = vmatpush.msra.mxu0 %v584
    %v586 = vand.u32 %v78, 4294901760
    %v587 = vsub.f32 %v78, %v586
    %588 = vmatpush.msra.mxu0 %v587
    %v589 = vand.u32 %v77, 4294901760
    %v590 = vsub.f32 %v77, %v589
    %591 = vmatpush.msra.mxu0 %v590
    %v592 = vand.u32 %v76, 4294901760
    %v593 = vsub.f32 %v76, %v592
    %594 = vmatpush.msra.mxu0 %v593
    %v595 = vand.u32 %v75, 4294901760
    %v596 = vsub.f32 %v75, %v595
    %597 = vmatpush.msra.mxu0 %v596
    %v598 = vand.u32 %v74, 4294901760
    %v599 = vsub.f32 %v74, %v598
    %600 = vmatpush.msra.mxu0 %v599
    %v601 = vand.u32 %v73, 4294901760
    %v602 = vsub.f32 %v73, %v601
    %603 = vmatpush.msra.mxu0 %v602
    %v604 = vand.u32 %v72, 4294901760
    %v605 = vsub.f32 %v72, %v604
    %606 = vmatpush.msra.mxu0 %v605
    %v607 = vand.u32 %v71, 4294901760
    %v608 = vsub.f32 %v71, %v607
    %609 = vmatpush.msra.mxu0 %v608
    %v610 = vand.u32 %v70, 4294901760
    %v611 = vsub.f32 %v70, %v610
    %612 = vmatpush.msra.mxu0 %v611
    %v613 = vand.u32 %v69, 4294901760
    %v614 = vsub.f32 %v69, %v613
    %615 = vmatpush.msra.mxu0 %v614
    %v616 = vand.u32 %v52, 4294901760
    %v617 = vsub.f32 %v52, %v616
    %618 = vmatmul.f32.gmra.mxu0 %v617
    %v619 = vpop.f32.mrf.mxu0
    %v620 = vadd.f32 %v566, %v619
    %621 = vdwg.mxu0
    %v622 = vand.u32 %v84, 4294901760
    %623 = vmatpush.msra.mxu0 %v622
    %v624 = vand.u32 %v83, 4294901760
    %625 = vmatpush.msra.mxu0 %v624
    %v626 = vand.u32 %v82, 4294901760
    %627 = vmatpush.msra.mxu0 %v626
    %v628 = vand.u32 %v81, 4294901760
    %629 = vmatpush.msra.mxu0 %v628
    %v630 = vand.u32 %v80, 4294901760
    %631 = vmatpush.msra.mxu0 %v630
    %v632 = vand.u32 %v79, 4294901760
    %633 = vmatpush.msra.mxu0 %v632
    %v634 = vand.u32 %v78, 4294901760
    %635 = vmatpush.msra.mxu0 %v634
    %v636 = vand.u32 %v77, 4294901760
    %637 = vmatpush.msra.mxu0 %v636
    %v638 = vand.u32 %v76, 4294901760
    %639 = vmatpush.msra.mxu0 %v638
    %v640 = vand.u32 %v75, 4294901760
    %641 = vmatpush.msra.mxu0 %v640
    %v642 = vand.u32 %v74, 4294901760
    %643 = vmatpush.msra.mxu0 %v642
    %v644 = vand.u32 %v73, 4294901760
    %645 = vmatpush.msra.mxu0 %v644
    %v646 = vand.u32 %v72, 4294901760
    %647 = vmatpush.msra.mxu0 %v646
    %v648 = vand.u32 %v71, 4294901760
    %649 = vmatpush.msra.mxu0 %v648
    %v650 = vand.u32 %v70, 4294901760
    %651 = vmatpush.msra.mxu0 %v650
    %v652 = vand.u32 %v69, 4294901760
    %653 = vmatpush.msra.mxu0 %v652
    %v654 = vand.u32 %v52, 4294901760
    %v655 = vsub.f32 %v52, %v654
    %v656 = vand.u32 %v655, 4294901760
    %657 = vmatmul.f32.gmra.mxu0 %v656
    %v658 = vpop.f32.mrf.mxu0
    %v659 = vadd.f32 %v620, %v658
    %660 = vdwg.mxu0
    %v661 = vand.u32 %v84, 4294901760
    %v662 = vsub.f32 %v84, %v661
    %v663 = vand.u32 %v662, 4294901760
    %664 = vmatpush.msra.mxu0 %v663
    %v665 = vand.u32 %v83, 4294901760
    %v666 = vsub.f32 %v83, %v665
    %v667 = vand.u32 %v666, 4294901760
    %668 = vmatpush.msra.mxu0 %v667
    %v669 = vand.u32 %v82, 4294901760
    %v670 = vsub.f32 %v82, %v669
    %v671 = vand.u32 %v670, 4294901760
    %672 = vmatpush.msra.mxu0 %v671
    %v673 = vand.u32 %v81, 4294901760
    %v674 = vsub.f32 %v81, %v673
    %v675 = vand.u32 %v674, 4294901760
    %676 = vmatpush.msra.mxu0 %v675
    %v677 = vand.u32 %v80, 4294901760
    %v678 = vsub.f32 %v80, %v677
    %v679 = vand.u32 %v678, 4294901760
    %680 = vmatpush.msra.mxu0 %v679
    %v681 = vand.u32 %v79, 4294901760
    %v682 = vsub.f32 %v79, %v681
    %v683 = vand.u32 %v682, 4294901760
    %684 = vmatpush.msra.mxu0 %v683
    %v685 = vand.u32 %v78, 4294901760
    %v686 = vsub.f32 %v78, %v685
    %v687 = vand.u32 %v686, 4294901760
    %688 = vmatpush.msra.mxu0 %v687
    %v689 = vand.u32 %v77, 4294901760
    %v690 = vsub.f32 %v77, %v689
    %v691 = vand.u32 %v690, 4294901760
    %692 = vmatpush.msra.mxu0 %v691
    %v693 = vand.u32 %v76, 4294901760
    %v694 = vsub.f32 %v76, %v693
    %v695 = vand.u32 %v694, 4294901760
    %696 = vmatpush.msra.mxu0 %v695
    %v697 = vand.u32 %v75, 4294901760
    %v698 = vsub.f32 %v75, %v697
    %v699 = vand.u32 %v698, 4294901760
    %700 = vmatpush.msra.mxu0 %v699
    %v701 = vand.u32 %v74, 4294901760
    %v702 = vsub.f32 %v74, %v701
    %v703 = vand.u32 %v702, 4294901760
    %704 = vmatpush.msra.mxu0 %v703
    %v705 = vand.u32 %v73, 4294901760
    %v706 = vsub.f32 %v73, %v705
    %v707 = vand.u32 %v706, 4294901760
    %708 = vmatpush.msra.mxu0 %v707
    %v709 = vand.u32 %v72, 4294901760
    %v710 = vsub.f32 %v72, %v709
    %v711 = vand.u32 %v710, 4294901760
    %712 = vmatpush.msra.mxu0 %v711
    %v713 = vand.u32 %v71, 4294901760
    %v714 = vsub.f32 %v71, %v713
    %v715 = vand.u32 %v714, 4294901760
    %716 = vmatpush.msra.mxu0 %v715
    %v717 = vand.u32 %v70, 4294901760
    %v718 = vsub.f32 %v70, %v717
    %v719 = vand.u32 %v718, 4294901760
    %720 = vmatpush.msra.mxu0 %v719
    %v721 = vand.u32 %v69, 4294901760
    %v722 = vsub.f32 %v69, %v721
    %v723 = vand.u32 %v722, 4294901760
    %724 = vmatpush.msra.mxu0 %v723
    %v725 = vand.u32 %v52, 4294901760
    %726 = vmatmul.f32.gmra.mxu0 %v725
    %v727 = vpop.f32.mrf.mxu0
    %v728 = vadd.f32 %v659, %v727
    %729 = vdwg.mxu0
    %v730 = vand.u32 %v84, 4294901760
    %731 = vmatpush.msra.mxu0 %v730
    %v732 = vand.u32 %v83, 4294901760
    %733 = vmatpush.msra.mxu0 %v732
    %v734 = vand.u32 %v82, 4294901760
    %735 = vmatpush.msra.mxu0 %v734
    %v736 = vand.u32 %v81, 4294901760
    %737 = vmatpush.msra.mxu0 %v736
    %v738 = vand.u32 %v80, 4294901760
    %739 = vmatpush.msra.mxu0 %v738
    %v740 = vand.u32 %v79, 4294901760
    %741 = vmatpush.msra.mxu0 %v740
    %v742 = vand.u32 %v78, 4294901760
    %743 = vmatpush.msra.mxu0 %v742
    %v744 = vand.u32 %v77, 4294901760
    %745 = vmatpush.msra.mxu0 %v744
    %v746 = vand.u32 %v76, 4294901760
    %747 = vmatpush.msra.mxu0 %v746
    %v748 = vand.u32 %v75, 4294901760
    %749 = vmatpush.msra.mxu0 %v748
    %v750 = vand.u32 %v74, 4294901760
    %751 = vmatpush.msra.mxu0 %v750
    %v752 = vand.u32 %v73, 4294901760
    %753 = vmatpush.msra.mxu0 %v752
    %v754 = vand.u32 %v72, 4294901760
    %755 = vmatpush.msra.mxu0 %v754
    %v756 = vand.u32 %v71, 4294901760
    %757 = vmatpush.msra.mxu0 %v756
    %v758 = vand.u32 %v70, 4294901760
    %759 = vmatpush.msra.mxu0 %v758
    %v760 = vand.u32 %v69, 4294901760
    %761 = vmatpush.msra.mxu0 %v760
    %v762 = vand.u32 %v52, 4294901760
    %763 = vmatmul.f32.gmra.mxu0 %v762
    %v764 = vpop.f32.mrf.mxu0
    %v765 = vadd.f32 %v728, %v764
    %766 = vdwg.mxu0
    %v767 = vrcp.pop %v765
    %v768 = vmul.f32 %v765, %v767
    %v769 = vsub.f32 1.0, %v768
    %v770 = vmul.f32 %v767, %v769
    %v771 = vadd.f32 %v767, %v770
    %vm772 = vweird.f32 %v765
    %vm773 = vweird.f32 %v767
    %vm774 = vmor %vm772, %vm773
    %v775 = vsel %vm774, %v767, %v771
    %v776 = vand.u32 2147483647, %v765
    %vm777 = vcmp.eq.f32.partialorder %v776, 8.507059e+37
    %v778 = vand.u32 %v765, 2147483648
    %v779 = vor.u32 1.1754944e-38, %v778
    %v780 = vsel %vm777, %v779, %v775
    %782 = vset.pattern.permute.xlu0 2
    %783 = vperm.xlu0 %782, %v780
    %v784 = vpop.permute.xlu0 %783
    %v786 = vmul.f32 %v765, %v784
    %787 = vst [vmem:[#allocation7] sm:$0xff] %v786
    // Predicated region
    $region18: #{tpu_custom_call.1} parent=1 // pred_check
      _
    $region19: #{tpu_custom_call.1} parent=1 // pred_check_branch
      %789 = sbr.rel (0) target = $region21
    $region20: #{tpu_custom_call.1} parent=1 // pred_region
      %791 = vsyncadd [#allocation4], 0
      %s793 = sshll.u32 [#allocation7], 4
      %s794 = int_to_ptr.vmem [resolvable:$true] %s793
      %s795 = sshll.u32 %s2, 4
      %s796 = int_to_ptr.hbm [resolvable:$true] %s795
      %798 = dma.vmem_to_hbm [thread:$0]  %s794, 128, %s796, [#allocation4]
    $region21: #{tpu_custom_call.1} parent=1 // pred_fallthru
      _
    // Predicated region
    $region22: #{tpu_custom_call.1} parent=1 // pred_check
      _
    $region23: #{tpu_custom_call.1} parent=1 // pred_check_branch
      %800 = sbr.rel (0) target = $region25
    $region24: #{tpu_custom_call.1} parent=1 // pred_region
      %802 = dma.done [#allocation4], 128
    $region25: #{tpu_custom_call.1} parent=1 // pred_fallthru
      _
    %803 = vsyncpa [#allocation3], 1
    %804 = vsyncpa [#allocation6], 1
    %805 = vsyncpa [#allocation4], 1

</llo_original>
